<compile_context>
chip_gen: v7x
topology: tpu7x:2x2x1
jax: 0.10.0
libtpu: 0.0.40
codegen_flags: <defaults>
</compile_context>

<pallas_src>
import functools

import jax
import jax.numpy as jnp
from jax.experimental import pallas as pl
from jax.experimental.pallas import tpu as pltpu

DIM = 3
INDIM = DIM * 2        # 6
MIDDIM = 256
MIDDIM2 = MIDDIM * 2   # 512
OUTDIM = DIM           # 3
OUT_PAD = 8            # small lane padding of the HBM output (32 B per row)


def _detect_tanh_dtype():
    # bf16 tanh on v6e/v7x (EUP supports bf16); f32 on v5e (no bf16 EUP).
    try:
        kind = jax.devices()[0].device_kind.lower()
    except Exception:
        kind = ""
    return jnp.float32 if "v5" in kind else jnp.bfloat16


_TANH_DTYPE = _detect_tanh_dtype()


def _mlp_kernel(x_ref, w1_ref, b1_ref, w2_ref, b2_ref, w3_ref, b3_ref, o_ref):
    # Layer 1: Linear(6 -> 256) + ReLU.  bf16 MXU pass, f32 accumulation;
    # K=6 under-utilizes the MXU but is a single latency-trivial pass.
    h1 = jnp.dot(x_ref[...].astype(jnp.bfloat16), w1_ref[...],
                 preferred_element_type=jnp.float32)
    h1 = jnp.maximum(h1 + b1_ref[...], 0.0)

    # Layer 2: Linear(256 -> 512) — dominant matmul.  bf16 operands, f32 acc.
    h2 = jnp.dot(h1.astype(jnp.bfloat16), w2_ref[...],
                 preferred_element_type=jnp.float32)
    # Bias add in f32; tanh in bf16 on v6e/v7x (EUP slot), f32 on v5e.
    h2 = jnp.tanh((h2 + b2_ref[...]).astype(_TANH_DTYPE)).astype(jnp.bfloat16)

    # Layer 3: Linear(512 -> 8 padded).  bf16 MXU pass, f32 acc.  The 8-lane
    # store is a masked VMEM vst (cheap); HBM writeback is 32 B/row instead
    # of the previous 512 B/row.
    out = jnp.dot(h2, w3_ref[...], preferred_element_type=jnp.float32)
    o_ref[...] = (out + b3_ref[...]).astype(o_ref.dtype)


def _resident(shape):
    # Weights/biases: constant index_map keeps them VMEM-resident across the
    # batch grid.  (pl.Buffered(1) single-buffering would reclaim ~0.5 MiB of
    # double-buffer VMEM, but buffer_count=1 support varies across jax
    # versions and the weights total well under 0.5 MiB — skipped.)
    return pl.BlockSpec(shape, lambda i: (0, 0))


@functools.partial(jax.jit, static_argnames=("tile_b",))
def generator_forward(x, params, *, tile_b=2048):
    """x: [B, INDIM] float32 -> [B, OUTDIM] float32."""
    w1, b1, w2, b2, w3, b3 = params
    B = x.shape[0]

    # Batch tile: multiple of 8 (sublane), capped at tile_b.
    b_rounded = -(-B // 8) * 8
    TB = min(tile_b, b_rounded)
    # Keep >= 2 grid steps whenever possible so the "parallel" batch axis can
    # shard across both TensorCores on v7x (megacore).
    if b_rounded // TB < 2 and b_rounded >= 16:
        TB = -(-(b_rounded // 2) // 8) * 8
    Bp = -(-B // TB) * TB
    if Bp != B:
        x = jnp.pad(x, ((0, Bp - B), (0, 0)))

    # All MXU operands in bf16 (cast once; weights stay resident in VMEM).
    w1_bf16 = w1.astype(jnp.bfloat16)
    w2_bf16 = w2.astype(jnp.bfloat16)
    # Layer-3 weight/bias padded to 8 output lanes (cheap HBM writeback).
    w3_p = jnp.pad(w3, ((0, 0), (0, OUT_PAD - OUTDIM))).astype(jnp.bfloat16)
    b3_p = jnp.pad(b3, ((0, 0), (0, OUT_PAD - OUTDIM)))

    # TODO(synk): if an xprof trace ever shows exposed input DMA, repack x
    # lane-dense (e.g. (Bp//64, 384)) and relayout in-kernel (XLU has slack).

    out = pl.pallas_call(
        _mlp_kernel,
        out_shape=jax.ShapeDtypeStruct((Bp, OUT_PAD), jnp.float32),
        grid=(Bp // TB,),
        in_specs=[
            pl.BlockSpec((TB, INDIM), lambda i: (i, 0)),   # x tile (streamed)
            _resident((INDIM, MIDDIM)),                    # w1 (bf16)
            _resident((1, MIDDIM)),                        # b1
            _resident((MIDDIM, MIDDIM2)),                  # w2 (bf16)
            _resident((1, MIDDIM2)),                       # b2
            _resident((MIDDIM2, OUT_PAD)),                 # w3 (bf16, padded)
            _resident((1, OUT_PAD)),                       # b3 (padded)
        ],
        out_specs=pl.BlockSpec((TB, OUT_PAD), lambda i: (i, 0)),
        compiler_params=pltpu.CompilerParams(
            dimension_semantics=("parallel",),
            # Headroom for tile_b up to ~4096 on v5e/v6e (128 MiB VMEM) while
            # staying well inside v7x's 64 MiB physical VMEM.
            vmem_limit_bytes=48 * 1024 * 1024,
        ),
    )(x, w1_bf16, b1, w2_bf16, b2, w3_p, b3_p)

    return out[:B, :OUTDIM]


def init_params(key):
    """Deterministic init matching the PyTorch layer shapes (weights stored
    as [in_features, out_features], i.e. transposed vs PyTorch)."""
    ks = jax.random.split(key, 6)

    def linear(kw, kb, fan_in, fan_out):
        bound = 1.0 / jnp.sqrt(fan_in)
        w = jax.random.uniform(kw, (fan_in, fan_out), jnp.float32, -bound, bound)
        b = jax.random.uniform(kb, (1, fan_out), jnp.float32, -bound, bound)
        return w, b

    w1, b1 = linear(ks[0], ks[1], INDIM, MIDDIM)
    w2, b2 = linear(ks[2], ks[3], MIDDIM, MIDDIM2)
    w3, b3 = linear(ks[4], ks[5], MIDDIM2, OUTDIM)
    return (w1, b1, w2, b2, w3, b3)


def _reference_f32(x, params):
    """Full-f32 reference matching the PyTorch module's forward."""
    w1, b1, w2, b2, w3, b3 = params
    h1 = jnp.maximum(x @ w1 + b1, 0.0)
    h2 = jnp.tanh(h1 @ w2 + b2)
    return h2 @ w3 + b3


if __name__ == "__main__":
    key = jax.random.PRNGKey(0)
    k_params, k_x = jax.random.split(key)

    params = init_params(k_params)
    B = 10  # small batch of particles / states (also exercises the pad path)
    x = jax.random.normal(k_x, (B, INDIM), jnp.float32)

    out = generator_forward(x, params)
    out = jax.block_until_ready(out)

    ref = _reference_f32(x, params)
    assert out.shape == (B, OUTDIM)
    # Tolerance relaxed vs the pure-f32 reference: all MXU passes use bf16
    # operands (f32 accumulation) and the tanh may run in bf16; observed
    # error is ~1e-2 absolute here.
    assert jnp.allclose(out, ref, atol=5e-2, rtol=5e-2), (
        float(jnp.max(jnp.abs(out - ref))))

    print("KERNEL_OK")
</pallas_src>

<mosaic_0001>
module attributes {stable_mosaic.version = 11 : i64} {
  func.func @_mlp_kernel(%arg0: i32, %arg1: memref<8x6xf32, #tpu.memory_space<vmem>>, %arg2: memref<6x256xbf16, #tpu.memory_space<vmem>>, %arg3: memref<1x256xf32, #tpu.memory_space<vmem>>, %arg4: memref<256x512xbf16, #tpu.memory_space<vmem>>, %arg5: memref<1x512xf32, #tpu.memory_space<vmem>>, %arg6: memref<512x8xbf16, #tpu.memory_space<vmem>>, %arg7: memref<1x8xf32, #tpu.memory_space<vmem>>, %arg8: memref<8x8xf32, #tpu.memory_space<vmem>>) attributes {dimension_semantics = [#tpu.dimension_semantics<parallel>], iteration_bounds = array<i64: 2>, scalar_prefetch = 0 : i64, scratch_operands = 0 : i64, tpu.core_type = #tpu.core_type<tc>, window_params = [{transform_indices = @transform_0, window_bounds = array<i64: 8, 6>}, {pipeline_mode = #tpu.pipeline_mode<synchronous>, transform_indices = @transform_1, window_bounds = array<i64: 6, 256>}, {pipeline_mode = #tpu.pipeline_mode<synchronous>, transform_indices = @transform_2, window_bounds = array<i64: 1, 256>}, {pipeline_mode = #tpu.pipeline_mode<synchronous>, transform_indices = @transform_3, window_bounds = array<i64: 256, 512>}, {pipeline_mode = #tpu.pipeline_mode<synchronous>, transform_indices = @transform_4, window_bounds = array<i64: 1, 512>}, {pipeline_mode = #tpu.pipeline_mode<synchronous>, transform_indices = @transform_5, window_bounds = array<i64: 512, 8>}, {pipeline_mode = #tpu.pipeline_mode<synchronous>, transform_indices = @transform_6, window_bounds = array<i64: 1, 8>}, {transform_indices = @transform_7, window_bounds = array<i64: 8, 8>}]} {
    %c0 = arith.constant 0 : index
    %c0_0 = arith.constant 0 : index
    %0 = vector.load %arg1[%c0, %c0_0] : memref<8x6xf32, #tpu.memory_space<vmem>>, vector<8x6xf32>
    %1 = arith.truncf %0 : vector<8x6xf32> to vector<8x6xbf16>
    %c0_1 = arith.constant 0 : index
    %c0_2 = arith.constant 0 : index
    %2 = vector.load %arg2[%c0_1, %c0_2] : memref<6x256xbf16, #tpu.memory_space<vmem>>, vector<6x256xbf16>
    %cst = arith.constant dense<0.000000e+00> : vector<8x256xf32>
    %3 = tpu.matmul %1, %2, %cst {dimension_numbers = #tpu.dot_dimension_numbers<[1], [0], [0], [1], [0, 0, 1, 1], [], []>} : vector<8x6xbf16>, vector<6x256xbf16>, vector<8x256xf32> -> vector<8x256xf32>
    %c0_3 = arith.constant 0 : index
    %c0_4 = arith.constant 0 : index
    %4 = vector.load %arg3[%c0_3, %c0_4] : memref<1x256xf32, #tpu.memory_space<vmem>>, vector<1x256xf32>
    %5 = vector.broadcast %4 : vector<1x256xf32> to vector<8x256xf32>
    %6 = arith.addf %3, %5 : vector<8x256xf32>
    %cst_5 = arith.constant 0.000000e+00 : f32
    %7 = vector.broadcast %cst_5 : f32 to vector<8x256xf32>
    %8 = arith.maximumf %6, %7 : vector<8x256xf32>
    %9 = arith.truncf %8 : vector<8x256xf32> to vector<8x256xbf16>
    %c0_6 = arith.constant 0 : index
    %c0_7 = arith.constant 0 : index
    %10 = vector.load %arg4[%c0_6, %c0_7] : memref<256x512xbf16, #tpu.memory_space<vmem>>, vector<256x512xbf16>
    %cst_8 = arith.constant dense<0.000000e+00> : vector<8x512xf32>
    %11 = tpu.matmul %9, %10, %cst_8 {dimension_numbers = #tpu.dot_dimension_numbers<[1], [0], [0], [1], [0, 0, 1, 1], [], []>} : vector<8x256xbf16>, vector<256x512xbf16>, vector<8x512xf32> -> vector<8x512xf32>
    %c0_9 = arith.constant 0 : index
    %c0_10 = arith.constant 0 : index
    %12 = vector.load %arg5[%c0_9, %c0_10] : memref<1x512xf32, #tpu.memory_space<vmem>>, vector<1x512xf32>
    %13 = vector.broadcast %12 : vector<1x512xf32> to vector<8x512xf32>
    %14 = arith.addf %11, %13 : vector<8x512xf32>
    %15 = arith.truncf %14 : vector<8x512xf32> to vector<8x512xbf16>
    %16 = math.tanh %15 : vector<8x512xbf16>
    %c0_11 = arith.constant 0 : index
    %c0_12 = arith.constant 0 : index
    %17 = vector.load %arg6[%c0_11, %c0_12] : memref<512x8xbf16, #tpu.memory_space<vmem>>, vector<512x8xbf16>
    %cst_13 = arith.constant dense<0.000000e+00> : vector<8x8xf32>
    %18 = tpu.matmul %16, %17, %cst_13 {dimension_numbers = #tpu.dot_dimension_numbers<[1], [0], [0], [1], [0, 0, 1, 1], [], []>} : vector<8x512xbf16>, vector<512x8xbf16>, vector<8x8xf32> -> vector<8x8xf32>
    %c0_14 = arith.constant 0 : index
    %c0_15 = arith.constant 0 : index
    %19 = vector.load %arg7[%c0_14, %c0_15] : memref<1x8xf32, #tpu.memory_space<vmem>>, vector<1x8xf32>
    %20 = vector.broadcast %19 : vector<1x8xf32> to vector<8x8xf32>
    %21 = arith.addf %18, %20 : vector<8x8xf32>
    %c0_16 = arith.constant 0 : index
    %c0_17 = arith.constant 0 : index
    %22 = vector.load %arg8[%c0_16, %c0_17] : memref<8x8xf32, #tpu.memory_space<vmem>>, vector<8x8xf32>
    tpu.vector_store %arg8[%c0_16, %c0_17], %21 {strides = array<i32>} : memref<8x8xf32, #tpu.memory_space<vmem>>, vector<8x8xf32>,
    return
  }
  func.func @transform_0(%arg0: i32) -> (i32, i32) {
    %c0_i32 = arith.constant 0 : i32
    %c0_i32_0 = arith.constant 0 : i32
    return %arg0, %c0_i32 : i32, i32
  }
  func.func @transform_1(%arg0: i32) -> (i32, i32) {
    %c0_i32 = arith.constant 0 : i32
    %c0_i32_0 = arith.constant 0 : i32
    %c0_i32_1 = arith.constant 0 : i32
    return %c0_i32, %c0_i32_0 : i32, i32
  }
  func.func @transform_2(%arg0: i32) -> (i32, i32) {
    %c0_i32 = arith.constant 0 : i32
    %c0_i32_0 = arith.constant 0 : i32
    %c0_i32_1 = arith.constant 0 : i32
    return %c0_i32, %c0_i32_0 : i32, i32
  }
  func.func @transform_3(%arg0: i32) -> (i32, i32) {
    %c0_i32 = arith.constant 0 : i32
    %c0_i32_0 = arith.constant 0 : i32
    %c0_i32_1 = arith.constant 0 : i32
    return %c0_i32, %c0_i32_0 : i32, i32
  }
  func.func @transform_4(%arg0: i32) -> (i32, i32) {
    %c0_i32 = arith.constant 0 : i32
    %c0_i32_0 = arith.constant 0 : i32
    %c0_i32_1 = arith.constant 0 : i32
    return %c0_i32, %c0_i32_0 : i32, i32
  }
  func.func @transform_5(%arg0: i32) -> (i32, i32) {
    %c0_i32 = arith.constant 0 : i32
    %c0_i32_0 = arith.constant 0 : i32
    %c0_i32_1 = arith.constant 0 : i32
    return %c0_i32, %c0_i32_0 : i32, i32
  }
  func.func @transform_6(%arg0: i32) -> (i32, i32) {
    %c0_i32 = arith.constant 0 : i32
    %c0_i32_0 = arith.constant 0 : i32
    %c0_i32_1 = arith.constant 0 : i32
    return %c0_i32, %c0_i32_0 : i32, i32
  }
  func.func @transform_7(%arg0: i32) -> (i32, i32) {
    %c0_i32 = arith.constant 0 : i32
    %c0_i32_0 = arith.constant 0 : i32
    return %arg0, %c0_i32 : i32, i32
  }
}

</mosaic_0001>

<llo_original>
// kernel: generator_forward.1
$region0: #{generator_forward.1}
  #allocation0 [shape = 'u32[]', space=smem, size = 0x4, offset = 0x4, fixed_abs, tag = 'smem constant byte address 0x4 - core index']
  #allocation1 [shape = 'u32[144,128]{1,0:T(1,128)}', space=vmem, size = 0x12000, scoped, tag = 'internal scratch']
  %s0 = inlined_call_operand.vmem [shape: f32[16,6], index: 0, kind: input, shape index: {}]
  %s1 = inlined_call_operand.vmem [shape: bf16[6,256], index: 1, kind: input, shape index: {}]
  %s2 = inlined_call_operand.vmem [shape: f32[1,256], index: 2, kind: input, shape index: {}]
  %s3 = inlined_call_operand.vmem [shape: bf16[256,512], index: 3, kind: input, shape index: {}]
  %s4 = inlined_call_operand.vmem [shape: f32[1,512], index: 4, kind: input, shape index: {}]
  %s5 = inlined_call_operand.vmem [shape: bf16[512,8], index: 5, kind: input, shape index: {}]
  %s6 = inlined_call_operand.vmem [shape: f32[1,8], index: 6, kind: input, shape index: {}]
  %s7 = inlined_call_operand.vmem [shape: f32[16,8], index: 7, kind: output, shape index: {}]
  %s8 = sld [smem:[#allocation0]]
  $region61: #{generator_forward.1} parent=0
    _
  %s10 = ssub.s32 1, %s8
  %s11 = scalar_select 0, %s10, %s8
  loop: start=0, step=1, limit=4
  $region2: #{generator_forward.1} parent=0 // loop_pre_header
    _
  $region3: #{generator_forward.1} parent=0 // loop_header
    %s13 = sphi 0, %s17
    %p14 = scmp.ge.s32.totalorder %s13, 4
    %s23 = sphi 0, %s25
    %s26 = sphi 0, %s23
    %s27 = sphi 0, %s26
    %s43 = sphi 0, %s27
    %s47 = sphi 0, %s47
    %s49 = sphi 0, %s47
    %s50 = sphi 0, %s49
    %s64 = sphi 0, %s50
    %s68 = sphi 0, %s68
    %s70 = sphi 0, %s68
    %s71 = sphi 0, %s70
    %s85 = sphi 0, %s71
    %s89 = sphi 0, %s89
    %s91 = sphi 0, %s89
    %s92 = sphi 0, %s91
    %s106 = sphi 0, %s92
    %s110 = sphi 0, %s110
    %s112 = sphi 0, %s110
    %s113 = sphi 0, %s112
    %s127 = sphi 0, %s113
    %s131 = sphi 0, %s131
    %s133 = sphi 0, %s131
    %s134 = sphi 0, %s133
    %s148 = sphi 0, %s134
    %s152 = sphi 0, %s152
    %s154 = sphi 0, %s152
    %s155 = sphi 0, %s154
    %s169 = sphi 0, %s155
    %s175 = sphi 0, %s177
    %s178 = sphi 0, %s175
    %s179 = sphi 0, %s178
    %s195 = sphi 0, %s179
  $region4: #{generator_forward.1} parent=0 // loop_header_branch
    %16 = sbr.rel (%p14) target = $region8
  $region5: #{generator_forward.1} parent=0 // loop_body
    %s18 = ssub.s32 %s13, 1
    %s19 = ssub.s32 %s13, 2
    %s20 = sadd.s32 %s13, 1
    %s21 = ssub.s32 %s13, %s20
    %p22 = scmp.eq.s32.totalorder %s21, 0
    %s24 = sadd.s32 %s23, 1
    %s25 = scalar_select %p22, %s23, %s24
    %p28 = pneg %p22
    %p29 = scmp.eq.s32.totalorder %s13, 1
    %p30 = por %p28, %p29
    %p31 = scmp.ne.s32.totalorder %s23, %s26
    %p32 = scmp.eq.s32.totalorder %s13, 0
    %p33 = por %p31, %p32
    %p34 = scmp.ne.s32.totalorder %s23, %s26
    %p35 = scmp.eq.s32.totalorder %s18, 1
    %p36 = por %p34, %p35
    %p37 = scmp.ne.s32.totalorder %s26, %s27
    %p38 = scmp.eq.s32.totalorder %s18, 0
    %p39 = por %p37, %p38
    %p40 = scmp.ne.s32.totalorder %s26, %s27
    %p41 = scmp.eq.s32.totalorder %s19, 1
    %p42 = por %p40, %p41
    %p44 = scmp.ne.s32.totalorder %s27, %s43
    %p45 = scmp.eq.s32.totalorder %s19, 0
    %p46 = por %p44, %p45
    %s48 = sadd.s32 %s47, 1
    %p51 = scmp.eq.s32.totalorder %s13, 1
    %p52 = scmp.ne.s32.totalorder %s47, %s49
    %p53 = scmp.eq.s32.totalorder %s13, 0
    %p54 = por %p52, %p53
    %p55 = scmp.ne.s32.totalorder %s47, %s49
    %p56 = scmp.eq.s32.totalorder %s18, 1
    %p57 = por %p55, %p56
    %p58 = scmp.ne.s32.totalorder %s49, %s50
    %p59 = scmp.eq.s32.totalorder %s18, 0
    %p60 = por %p58, %p59
    %p61 = scmp.ne.s32.totalorder %s49, %s50
    %p62 = scmp.eq.s32.totalorder %s19, 1
    %p63 = por %p61, %p62
    %p65 = scmp.ne.s32.totalorder %s50, %s64
    %p66 = scmp.eq.s32.totalorder %s19, 0
    %p67 = por %p65, %p66
    %s69 = sadd.s32 %s68, 1
    %p72 = scmp.eq.s32.totalorder %s13, 1
    %p73 = scmp.ne.s32.totalorder %s68, %s70
    %p74 = scmp.eq.s32.totalorder %s13, 0
    %p75 = por %p73, %p74
    %p76 = scmp.ne.s32.totalorder %s68, %s70
    %p77 = scmp.eq.s32.totalorder %s18, 1
    %p78 = por %p76, %p77
    %p79 = scmp.ne.s32.totalorder %s70, %s71
    %p80 = scmp.eq.s32.totalorder %s18, 0
    %p81 = por %p79, %p80
    %p82 = scmp.ne.s32.totalorder %s70, %s71
    %p83 = scmp.eq.s32.totalorder %s19, 1
    %p84 = por %p82, %p83
    %p86 = scmp.ne.s32.totalorder %s71, %s85
    %p87 = scmp.eq.s32.totalorder %s19, 0
    %p88 = por %p86, %p87
    %s90 = sadd.s32 %s89, 1
    %p93 = scmp.eq.s32.totalorder %s13, 1
    %p94 = scmp.ne.s32.totalorder %s89, %s91
    %p95 = scmp.eq.s32.totalorder %s13, 0
    %p96 = por %p94, %p95
    %p97 = scmp.ne.s32.totalorder %s89, %s91
    %p98 = scmp.eq.s32.totalorder %s18, 1
    %p99 = por %p97, %p98
    %p100 = scmp.ne.s32.totalorder %s91, %s92
    %p101 = scmp.eq.s32.totalorder %s18, 0
    %p102 = por %p100, %p101
    %p103 = scmp.ne.s32.totalorder %s91, %s92
    %p104 = scmp.eq.s32.totalorder %s19, 1
    %p105 = por %p103, %p104
    %p107 = scmp.ne.s32.totalorder %s92, %s106
    %p108 = scmp.eq.s32.totalorder %s19, 0
    %p109 = por %p107, %p108
    %s111 = sadd.s32 %s110, 1
    %p114 = scmp.eq.s32.totalorder %s13, 1
    %p115 = scmp.ne.s32.totalorder %s110, %s112
    %p116 = scmp.eq.s32.totalorder %s13, 0
    %p117 = por %p115, %p116
    %p118 = scmp.ne.s32.totalorder %s110, %s112
    %p119 = scmp.eq.s32.totalorder %s18, 1
    %p120 = por %p118, %p119
    %p121 = scmp.ne.s32.totalorder %s112, %s113
    %p122 = scmp.eq.s32.totalorder %s18, 0
    %p123 = por %p121, %p122
    %p124 = scmp.ne.s32.totalorder %s112, %s113
    %p125 = scmp.eq.s32.totalorder %s19, 1
    %p126 = por %p124, %p125
    %p128 = scmp.ne.s32.totalorder %s113, %s127
    %p129 = scmp.eq.s32.totalorder %s19, 0
    %p130 = por %p128, %p129
    %s132 = sadd.s32 %s131, 1
    %p135 = scmp.eq.s32.totalorder %s13, 1
    %p136 = scmp.ne.s32.totalorder %s131, %s133
    %p137 = scmp.eq.s32.totalorder %s13, 0
    %p138 = por %p136, %p137
    %p139 = scmp.ne.s32.totalorder %s131, %s133
    %p140 = scmp.eq.s32.totalorder %s18, 1
    %p141 = por %p139, %p140
    %p142 = scmp.ne.s32.totalorder %s133, %s134
    %p143 = scmp.eq.s32.totalorder %s18, 0
    %p144 = por %p142, %p143
    %p145 = scmp.ne.s32.totalorder %s133, %s134
    %p146 = scmp.eq.s32.totalorder %s19, 1
    %p147 = por %p145, %p146
    %p149 = scmp.ne.s32.totalorder %s134, %s148
    %p150 = scmp.eq.s32.totalorder %s19, 0
    %p151 = por %p149, %p150
    %s153 = sadd.s32 %s152, 1
    %p156 = scmp.eq.s32.totalorder %s13, 1
    %p157 = scmp.ne.s32.totalorder %s152, %s154
    %p158 = scmp.eq.s32.totalorder %s13, 0
    %p159 = por %p157, %p158
    %p160 = scmp.ne.s32.totalorder %s152, %s154
    %p161 = scmp.eq.s32.totalorder %s18, 1
    %p162 = por %p160, %p161
    %p163 = scmp.ne.s32.totalorder %s154, %s155
    %p164 = scmp.eq.s32.totalorder %s18, 0
    %p165 = por %p163, %p164
    %p166 = scmp.ne.s32.totalorder %s154, %s155
    %p167 = scmp.eq.s32.totalorder %s19, 1
    %p168 = por %p166, %p167
    %p170 = scmp.ne.s32.totalorder %s155, %s169
    %p171 = scmp.eq.s32.totalorder %s19, 0
    %p172 = por %p170, %p171
    %s173 = ssub.s32 %s13, %s20
    %p174 = scmp.eq.s32.totalorder %s173, 0
    %s176 = sadd.s32 %s175, 1
    %s177 = scalar_select %p174, %s175, %s176
    %p180 = pneg %p174
    %p181 = scmp.eq.s32.totalorder %s13, 1
    %p182 = por %p180, %p181
    %p183 = scmp.ne.s32.totalorder %s175, %s178
    %p184 = scmp.eq.s32.totalorder %s13, 0
    %p185 = por %p183, %p184
    %p186 = scmp.ne.s32.totalorder %s175, %s178
    %p187 = scmp.eq.s32.totalorder %s18, 1
    %p188 = por %p186, %p187
    %p189 = scmp.ne.s32.totalorder %s178, %s179
    %p190 = scmp.eq.s32.totalorder %s18, 0
    %p191 = por %p189, %p190
    %p192 = scmp.ne.s32.totalorder %s178, %s179
    %p193 = scmp.eq.s32.totalorder %s19, 1
    %p194 = por %p192, %p193
    %p196 = scmp.ne.s32.totalorder %s179, %s195
    %p197 = scmp.eq.s32.totalorder %s19, 0
    %p198 = por %p196, %p197
    %p199 = scmp.le.s32.totalorder 1, %s13
    %p200 = scmp.lt.s32.totalorder %s13, 3
    %p201 = pnand %p199, %p200
    %p202 = pneg %p201
    // Predicated region
    $region9: #{generator_forward.1} parent=5 // pred_check
      _
    $region10: #{generator_forward.1} parent=5 // pred_check_branch
      %204 = sbr.rel (%p201) target = $region12
    $region11: #{generator_forward.1} parent=5 // pred_region
      %s205 = ssub.s32 %s13, 1
      // Predicated region
      $region13: #{generator_forward.1} parent=11 // pred_check
        %p206 = pneg %p60
      $region14: #{generator_forward.1} parent=11 // pred_check_branch
        %208 = sbr.rel (%p206) target = $region16
      $region15: #{generator_forward.1} parent=11 // pred_region
        _
      $region16: #{generator_forward.1} parent=11 // pred_fallthru
        _
      // Predicated region
      $region17: #{generator_forward.1} parent=11 // pred_check
        %p209 = pneg %p81
      $region18: #{generator_forward.1} parent=11 // pred_check_branch
        %211 = sbr.rel (%p209) target = $region20
      $region19: #{generator_forward.1} parent=11 // pred_region
        _
      $region20: #{generator_forward.1} parent=11 // pred_fallthru
        _
      // Predicated region
      $region21: #{generator_forward.1} parent=11 // pred_check
        %p212 = pneg %p102
      $region22: #{generator_forward.1} parent=11 // pred_check_branch
        %214 = sbr.rel (%p212) target = $region24
      $region23: #{generator_forward.1} parent=11 // pred_region
        _
      $region24: #{generator_forward.1} parent=11 // pred_fallthru
        _
      // Predicated region
      $region25: #{generator_forward.1} parent=11 // pred_check
        %p215 = pneg %p123
      $region26: #{generator_forward.1} parent=11 // pred_check_branch
        %217 = sbr.rel (%p215) target = $region28
      $region27: #{generator_forward.1} parent=11 // pred_region
        _
      $region28: #{generator_forward.1} parent=11 // pred_fallthru
        _
      // Predicated region
      $region29: #{generator_forward.1} parent=11 // pred_check
        %p218 = pneg %p144
      $region30: #{generator_forward.1} parent=11 // pred_check_branch
        %220 = sbr.rel (%p218) target = $region32
      $region31: #{generator_forward.1} parent=11 // pred_region
        _
      $region32: #{generator_forward.1} parent=11 // pred_fallthru
        _
      // Predicated region
      $region33: #{generator_forward.1} parent=11 // pred_check
        %p221 = pneg %p165
      $region34: #{generator_forward.1} parent=11 // pred_check_branch
        %223 = sbr.rel (%p221) target = $region36
      $region35: #{generator_forward.1} parent=11 // pred_region
        _
      $region36: #{generator_forward.1} parent=11 // pred_fallthru
        _
    $region12: #{generator_forward.1} parent=5 // pred_fallthru
      _
    %p224 = scmp.lt.s32.totalorder %s13, 2
    // Predicated region
    $region37: #{generator_forward.1} parent=5 // pred_check
      %p225 = pneg %p224
    $region38: #{generator_forward.1} parent=5 // pred_check_branch
      %227 = sbr.rel (%p225) target = $region40
    $region39: #{generator_forward.1} parent=5 // pred_region
      // Predicated region
      $region41: #{generator_forward.1} parent=39 // pred_check
        %p228 = pneg %p33
      $region42: #{generator_forward.1} parent=39 // pred_check_branch
        %230 = sbr.rel (%p228) target = $region44
      $region43: #{generator_forward.1} parent=39 // pred_region
        %p231 = scmp.lt.s32.totalorder %s13, 1
        %s232 = scalar_select %p231, %s13, 1
        %s233 = smul.addr %s232, 8
        %s234 = scalar_lea.vmem %s0, %s233
      $region44: #{generator_forward.1} parent=39 // pred_fallthru
        _
    $region40: #{generator_forward.1} parent=5 // pred_fallthru
      _
    %p235 = scmp.le.s32.totalorder 1, %s13
    %p236 = scmp.lt.s32.totalorder %s13, 3
    %p237 = pnand %p235, %p236
    %p238 = pneg %p237
    // Predicated region
    $region45: #{generator_forward.1} parent=5 // pred_check
      _
    $region46: #{generator_forward.1} parent=5 // pred_check_branch
      %240 = sbr.rel (%p237) target = $region48
    $region47: #{generator_forward.1} parent=5 // pred_region
      %s241 = ssub.s32 %s13, 1
      %p242 = scmp.lt.s32.totalorder %s18, 1
      %s243 = scalar_select %p242, %s18, 1
      %s244 = smul.addr %s243, 8
      %s245 = scalar_lea.vmem %s0, %s244
      %p246 = pneg %p39
      %p247 = pneg %p36
      %p248 = pneg %p60
      %p249 = pneg %p57
      %p250 = pneg %p81
      %p251 = pneg %p78
      %p252 = pneg %p102
      %p253 = pneg %p99
      %p254 = pneg %p123
      %p255 = pneg %p120
      %p256 = pneg %p144
      %p257 = pneg %p141
      %p258 = pneg %p165
      %p259 = pneg %p162
      %p260 = pneg %p191
      %p261 = pneg %p188
      %p262 = scmp.lt.s32.totalorder %s18, 1
      %s263 = scalar_select %p262, %s18, 1
      %s264 = smul.addr %s263, 8
      %s265 = scalar_lea.vmem %s7, %s264
      %p266 = scmp.lt.s32.totalorder %s18, 1
      %s267 = scalar_select %p266, %s18, 1
      %s268 = smul.addr %s267, 8
      %s269 = scalar_lea.vmem %s0, %s268
      %p270 = scmp.lt.s32.totalorder %s18, 1
      %s271 = scalar_select %p270, %s18, 1
      %s272 = smul.addr %s271, 8
      %s273 = scalar_lea.vmem %s7, %s272
      %v275 = vld [vmem:[%s269] sm:$0xff]
      %v276 = vpack.c.bf16 %v275, %v275
      %v277 = vld [vmem:[%s1] sm:$0x77]
      %v278 = vld [vmem:[%s2] sm:$0x3]
      %v280 = vlaneseq
      %v281 = vshrl.u32 %v280, 7
      %v282 = vsub.s32 0, %v281
      %v283 = vrot.slane %v278, %v282
      %v284 = vlaneseq
      %v285 = vshrl.u32 %v284, 7
      %v286 = vsub.s32 1, %v285
      %v287 = vrot.slane %v278, %v286
      %v291 = vunpack.c.l.b16 %v277
      %v292 = vunpack.c.h.b16 %v277
      %v293 = vpack.c.b16 %v291, %v291
      %v294 = vpack.c.b16 %v292, %v292
      %vm295 = vcmask 48128
      %v297 = vsel %vm295, %v276, 0
      %vm299 = vcmask 1042432
      %v301 = vsel %vm299, %v293, 0
      %v304 = vsel %vm299, %v294, 0
      %306 = vmatprep.subr.bf16.mxu0 %v304
      %307 = vmatpush1.bf16.msra.mxu0 %v301
      %308 = vmatprep.subr.bf16.mxu0 0
      %309 = vmatpush1.bf16.msra.mxu0 0
      %310 = vmatprep.subr.bf16.mxu0 0
      %311 = vmatpush1.bf16.msra.mxu0 0
      %312 = vmatprep.subr.bf16.mxu0 0
      %313 = vmatpush1.bf16.msra.mxu0 0
      %314 = vmatprep.subr.bf16.mxu0 0
      %315 = vmatpush1.bf16.msra.mxu0 0
      %316 = vmatprep.subr.bf16.mxu0 0
      %317 = vmatpush1.bf16.msra.mxu0 0
      %318 = vmatprep.subr.bf16.mxu0 0
      %319 = vmatpush1.bf16.msra.mxu0 0
      %320 = vmatprep.subr.bf16.mxu0 0
      %321 = vmatpush1.bf16.msra.mxu0 0
      %322 = vmatprep.subr.bf16.mxu0 0
      %323 = vmatpush1.bf16.msra.mxu0 0
      %324 = vmatprep.subr.bf16.mxu0 0
      %325 = vmatpush1.bf16.msra.mxu0 0
      %326 = vmatprep.subr.bf16.mxu0 0
      %327 = vmatpush1.bf16.msra.mxu0 0
      %328 = vmatprep.subr.bf16.mxu0 0
      %329 = vmatpush1.bf16.msra.mxu0 0
      %330 = vmatprep.subr.bf16.mxu0 0
      %331 = vmatpush1.bf16.msra.mxu0 0
      %332 = vmatprep.subr.bf16.mxu0 0
      %333 = vmatpush1.bf16.msra.mxu0 0
      %334 = vmatprep.subr.bf16.mxu0 0
      %335 = vmatpush1.bf16.msra.mxu0 0
      %336 = vmatprep.subr.bf16.mxu0 0
      %337 = vmatpush1.bf16.msra.mxu0 0
      %338 = vmatprep.mubr.bf16.mxu0 0
      %339 = vmatmul.mubr.bf16.gmra.mrb[0].mxu0 %v297
      %v340 = vpop.f32.mrb[0].mxu0
      %v341 = vadd.f32 %v283, %v340
      %v342 = vpop.f32.mrb[0].mxu0
      %v343 = vadd.f32 %v287, %v342
      %v344 = vpop.f32.mrb[0].mxu0
      %v345 = vpop.f32.mrb[0].mxu0
      %346 = vdwg.mxu0
      %v347 = vmax.f32 %v341, 0.0
      %v348 = vmax.f32 %v343, 0.0
      %v349 = vpack.c.bf16 %v347, %v347
      %v350 = vpack.c.bf16 %v348, %v348
      %v351 = vld [vmem:[%s3] sm:$0xff]
      %v352 = vld [vmem:[%s3 + $0x8] sm:$0xff]
      %v353 = vld [vmem:[%s3 + $0x10] sm:$0xff]
      %v354 = vld [vmem:[%s3 + $0x18] sm:$0xff]
      %v355 = vld [vmem:[%s3 + $0x20] sm:$0xff]
      %v356 = vld [vmem:[%s3 + $0x28] sm:$0xff]
      %v357 = vld [vmem:[%s3 + $0x30] sm:$0xff]
      %v358 = vld [vmem:[%s3 + $0x38] sm:$0xff]
      %v359 = vld [vmem:[%s3 + $0x40] sm:$0xff]
      %v360 = vld [vmem:[%s3 + $0x48] sm:$0xff]
      %v361 = vld [vmem:[%s3 + $0x50] sm:$0xff]
      %v362 = vld [vmem:[%s3 + $0x58] sm:$0xff]
      %v363 = vld [vmem:[%s3 + $0x60] sm:$0xff]
      %v364 = vld [vmem:[%s3 + $0x68] sm:$0xff]
      %v365 = vld [vmem:[%s3 + $0x70] sm:$0xff]
      %v366 = vld [vmem:[%s3 + $0x78] sm:$0xff]
      %v367 = vld [vmem:[%s3 + $0x80] sm:$0xff]
      %v368 = vld [vmem:[%s3 + $0x88] sm:$0xff]
      %v369 = vld [vmem:[%s3 + $0x90] sm:$0xff]
      %v370 = vld [vmem:[%s3 + $0x98] sm:$0xff]
      %v371 = vld [vmem:[%s3 + $0xa0] sm:$0xff]
      %v372 = vld [vmem:[%s3 + $0xa8] sm:$0xff]
      %v373 = vld [vmem:[%s3 + $0xb0] sm:$0xff]
      %v374 = vld [vmem:[%s3 + $0xb8] sm:$0xff]
      %v375 = vld [vmem:[%s3 + $0xc0] sm:$0xff]
      %v376 = vld [vmem:[%s3 + $0xc8] sm:$0xff]
      %v377 = vld [vmem:[%s3 + $0xd0] sm:$0xff]
      %v378 = vld [vmem:[%s3 + $0xd8] sm:$0xff]
      %v379 = vld [vmem:[%s3 + $0xe0] sm:$0xff]
      %v380 = vld [vmem:[%s3 + $0xe8] sm:$0xff]
      %v381 = vld [vmem:[%s3 + $0xf0] sm:$0xff]
      %v382 = vld [vmem:[%s3 + $0xf8] sm:$0xff]
      %v383 = vld [vmem:[%s3 + $0x100] sm:$0xff]
      %v384 = vld [vmem:[%s3 + $0x108] sm:$0xff]
      %v385 = vld [vmem:[%s3 + $0x110] sm:$0xff]
      %v386 = vld [vmem:[%s3 + $0x118] sm:$0xff]
      %v387 = vld [vmem:[%s3 + $0x120] sm:$0xff]
      %v388 = vld [vmem:[%s3 + $0x128] sm:$0xff]
      %v389 = vld [vmem:[%s3 + $0x130] sm:$0xff]
      %v390 = vld [vmem:[%s3 + $0x138] sm:$0xff]
      %v391 = vld [vmem:[%s3 + $0x140] sm:$0xff]
      %v392 = vld [vmem:[%s3 + $0x148] sm:$0xff]
      %v393 = vld [vmem:[%s3 + $0x150] sm:$0xff]
      %v394 = vld [vmem:[%s3 + $0x158] sm:$0xff]
      %v395 = vld [vmem:[%s3 + $0x160] sm:$0xff]
      %v396 = vld [vmem:[%s3 + $0x168] sm:$0xff]
      %v397 = vld [vmem:[%s3 + $0x170] sm:$0xff]
      %v398 = vld [vmem:[%s3 + $0x178] sm:$0xff]
      %v399 = vld [vmem:[%s3 + $0x180] sm:$0xff]
      %v400 = vld [vmem:[%s3 + $0x188] sm:$0xff]
      %v401 = vld [vmem:[%s3 + $0x190] sm:$0xff]
      %v402 = vld [vmem:[%s3 + $0x198] sm:$0xff]
      %v403 = vld [vmem:[%s3 + $0x1a0] sm:$0xff]
      %v404 = vld [vmem:[%s3 + $0x1a8] sm:$0xff]
      %v405 = vld [vmem:[%s3 + $0x1b0] sm:$0xff]
      %v406 = vld [vmem:[%s3 + $0x1b8] sm:$0xff]
      %v407 = vld [vmem:[%s3 + $0x1c0] sm:$0xff]
      %v408 = vld [vmem:[%s3 + $0x1c8] sm:$0xff]
      %v409 = vld [vmem:[%s3 + $0x1d0] sm:$0xff]
      %v410 = vld [vmem:[%s3 + $0x1d8] sm:$0xff]
      %v411 = vld [vmem:[%s3 + $0x1e0] sm:$0xff]
      %v412 = vld [vmem:[%s3 + $0x1e8] sm:$0xff]
      %v413 = vld [vmem:[%s3 + $0x1f0] sm:$0xff]
      %v414 = vld [vmem:[%s3 + $0x1f8] sm:$0xff]
      %v415 = vld [vmem:[%s4] sm:$0xf]
      %v417 = vlaneseq
      %v418 = vshrl.u32 %v417, 7
      %v419 = vsub.s32 0, %v418
      %v420 = vrot.slane %v415, %v419
      %v421 = vlaneseq
      %v422 = vshrl.u32 %v421, 7
      %v423 = vsub.s32 1, %v422
      %v424 = vrot.slane %v415, %v423
      %v425 = vlaneseq
      %v426 = vshrl.u32 %v425, 7
      %v427 = vsub.s32 2, %v426
      %v428 = vrot.slane %v415, %v427
      %v429 = vlaneseq
      %v430 = vshrl.u32 %v429, 7
      %v431 = vsub.s32 3, %v430
      %v432 = vrot.slane %v415, %v431
      %v501 = vunpack.c.l.b16 %v351
      %v502 = vunpack.c.h.b16 %v351
      %v503 = vunpack.c.l.b16 %v352
      %v504 = vunpack.c.h.b16 %v352
      %v505 = vunpack.c.l.b16 %v353
      %v506 = vunpack.c.h.b16 %v353
      %v507 = vunpack.c.l.b16 %v354
      %v508 = vunpack.c.h.b16 %v354
      %v509 = vunpack.c.l.b16 %v355
      %v510 = vunpack.c.h.b16 %v355
      %v511 = vunpack.c.l.b16 %v356
      %v512 = vunpack.c.h.b16 %v356
      %v513 = vunpack.c.l.b16 %v357
      %v514 = vunpack.c.h.b16 %v357
      %v515 = vunpack.c.l.b16 %v358
      %v516 = vunpack.c.h.b16 %v358
      %v517 = vunpack.c.l.b16 %v359
      %v518 = vunpack.c.h.b16 %v359
      %v519 = vunpack.c.l.b16 %v360
      %v520 = vunpack.c.h.b16 %v360
      %v521 = vunpack.c.l.b16 %v361
      %v522 = vunpack.c.h.b16 %v361
      %v523 = vunpack.c.l.b16 %v362
      %v524 = vunpack.c.h.b16 %v362
      %v525 = vunpack.c.l.b16 %v363
      %v526 = vunpack.c.h.b16 %v363
      %v527 = vunpack.c.l.b16 %v364
      %v528 = vunpack.c.h.b16 %v364
      %v529 = vunpack.c.l.b16 %v365
      %v530 = vunpack.c.h.b16 %v365
      %v531 = vunpack.c.l.b16 %v366
      %v532 = vunpack.c.h.b16 %v366
      %v533 = vunpack.c.l.b16 %v367
      %v534 = vunpack.c.h.b16 %v367
      %v535 = vunpack.c.l.b16 %v368
      %v536 = vunpack.c.h.b16 %v368
      %v537 = vunpack.c.l.b16 %v369
      %v538 = vunpack.c.h.b16 %v369
      %v539 = vunpack.c.l.b16 %v370
      %v540 = vunpack.c.h.b16 %v370
      %v541 = vunpack.c.l.b16 %v371
      %v542 = vunpack.c.h.b16 %v371
      %v543 = vunpack.c.l.b16 %v372
      %v544 = vunpack.c.h.b16 %v372
      %v545 = vunpack.c.l.b16 %v373
      %v546 = vunpack.c.h.b16 %v373
      %v547 = vunpack.c.l.b16 %v374
      %v548 = vunpack.c.h.b16 %v374
      %v549 = vunpack.c.l.b16 %v375
      %v550 = vunpack.c.h.b16 %v375
      %v551 = vunpack.c.l.b16 %v376
      %v552 = vunpack.c.h.b16 %v376
      %v553 = vunpack.c.l.b16 %v377
      %v554 = vunpack.c.h.b16 %v377
      %v555 = vunpack.c.l.b16 %v378
      %v556 = vunpack.c.h.b16 %v378
      %v557 = vunpack.c.l.b16 %v379
      %v558 = vunpack.c.h.b16 %v379
      %v559 = vunpack.c.l.b16 %v380
      %v560 = vunpack.c.h.b16 %v380
      %v561 = vunpack.c.l.b16 %v381
      %v562 = vunpack.c.h.b16 %v381
      %v563 = vunpack.c.l.b16 %v382
      %v564 = vunpack.c.h.b16 %v382
      %v565 = vunpack.c.l.b16 %v383
      %v566 = vunpack.c.h.b16 %v383
      %v567 = vunpack.c.l.b16 %v384
      %v568 = vunpack.c.h.b16 %v384
      %v569 = vunpack.c.l.b16 %v385
      %v570 = vunpack.c.h.b16 %v385
      %v571 = vunpack.c.l.b16 %v386
      %v572 = vunpack.c.h.b16 %v386
      %v573 = vunpack.c.l.b16 %v387
      %v574 = vunpack.c.h.b16 %v387
      %v575 = vunpack.c.l.b16 %v388
      %v576 = vunpack.c.h.b16 %v388
      %v577 = vunpack.c.l.b16 %v389
      %v578 = vunpack.c.h.b16 %v389
      %v579 = vunpack.c.l.b16 %v390
      %v580 = vunpack.c.h.b16 %v390
      %v581 = vunpack.c.l.b16 %v391
      %v582 = vunpack.c.h.b16 %v391
      %v583 = vunpack.c.l.b16 %v392
      %v584 = vunpack.c.h.b16 %v392
      %v585 = vunpack.c.l.b16 %v393
      %v586 = vunpack.c.h.b16 %v393
      %v587 = vunpack.c.l.b16 %v394
      %v588 = vunpack.c.h.b16 %v394
      %v589 = vunpack.c.l.b16 %v395
      %v590 = vunpack.c.h.b16 %v395
      %v591 = vunpack.c.l.b16 %v396
      %v592 = vunpack.c.h.b16 %v396
      %v593 = vunpack.c.l.b16 %v397
      %v594 = vunpack.c.h.b16 %v397
      %v595 = vunpack.c.l.b16 %v398
      %v596 = vunpack.c.h.b16 %v398
      %v597 = vunpack.c.l.b16 %v399
      %v598 = vunpack.c.h.b16 %v399
      %v599 = vunpack.c.l.b16 %v400
      %v600 = vunpack.c.h.b16 %v400
      %v601 = vunpack.c.l.b16 %v401
      %v602 = vunpack.c.h.b16 %v401
      %v603 = vunpack.c.l.b16 %v402
      %v604 = vunpack.c.h.b16 %v402
      %v605 = vunpack.c.l.b16 %v403
      %v606 = vunpack.c.h.b16 %v403
      %v607 = vunpack.c.l.b16 %v404
      %v608 = vunpack.c.h.b16 %v404
      %v609 = vunpack.c.l.b16 %v405
      %v610 = vunpack.c.h.b16 %v405
      %v611 = vunpack.c.l.b16 %v406
      %v612 = vunpack.c.h.b16 %v406
      %v613 = vunpack.c.l.b16 %v407
      %v614 = vunpack.c.h.b16 %v407
      %v615 = vunpack.c.l.b16 %v408
      %v616 = vunpack.c.h.b16 %v408
      %v617 = vunpack.c.l.b16 %v409
      %v618 = vunpack.c.h.b16 %v409
      %v619 = vunpack.c.l.b16 %v410
      %v620 = vunpack.c.h.b16 %v410
      %v621 = vunpack.c.l.b16 %v411
      %v622 = vunpack.c.h.b16 %v411
      %v623 = vunpack.c.l.b16 %v412
      %v624 = vunpack.c.h.b16 %v412
      %v625 = vunpack.c.l.b16 %v413
      %v626 = vunpack.c.h.b16 %v413
      %v627 = vunpack.c.l.b16 %v414
      %v628 = vunpack.c.h.b16 %v414
      %v629 = vpack.c.b16 %v505, %v501
      %v630 = vpack.c.b16 %v506, %v502
      %v631 = vpack.c.b16 %v507, %v503
      %v632 = vpack.c.b16 %v508, %v504
      %v633 = vpack.c.b16 %v513, %v509
      %v634 = vpack.c.b16 %v514, %v510
      %v635 = vpack.c.b16 %v515, %v511
      %v636 = vpack.c.b16 %v516, %v512
      %v637 = vpack.c.b16 %v521, %v517
      %v638 = vpack.c.b16 %v522, %v518
      %v639 = vpack.c.b16 %v523, %v519
      %v640 = vpack.c.b16 %v524, %v520
      %v641 = vpack.c.b16 %v529, %v525
      %v642 = vpack.c.b16 %v530, %v526
      %v643 = vpack.c.b16 %v531, %v527
      %v644 = vpack.c.b16 %v532, %v528
      %v645 = vpack.c.b16 %v537, %v533
      %v646 = vpack.c.b16 %v538, %v534
      %v647 = vpack.c.b16 %v539, %v535
      %v648 = vpack.c.b16 %v540, %v536
      %v649 = vpack.c.b16 %v545, %v541
      %v650 = vpack.c.b16 %v546, %v542
      %v651 = vpack.c.b16 %v547, %v543
      %v652 = vpack.c.b16 %v548, %v544
      %v653 = vpack.c.b16 %v553, %v549
      %v654 = vpack.c.b16 %v554, %v550
      %v655 = vpack.c.b16 %v555, %v551
      %v656 = vpack.c.b16 %v556, %v552
      %v657 = vpack.c.b16 %v561, %v557
      %v658 = vpack.c.b16 %v562, %v558
      %v659 = vpack.c.b16 %v563, %v559
      %v660 = vpack.c.b16 %v564, %v560
      %v661 = vpack.c.b16 %v569, %v565
      %v662 = vpack.c.b16 %v570, %v566
      %v663 = vpack.c.b16 %v571, %v567
      %v664 = vpack.c.b16 %v572, %v568
      %v665 = vpack.c.b16 %v577, %v573
      %v666 = vpack.c.b16 %v578, %v574
      %v667 = vpack.c.b16 %v579, %v575
      %v668 = vpack.c.b16 %v580, %v576
      %v669 = vpack.c.b16 %v585, %v581
      %v670 = vpack.c.b16 %v586, %v582
      %v671 = vpack.c.b16 %v587, %v583
      %v672 = vpack.c.b16 %v588, %v584
      %v673 = vpack.c.b16 %v593, %v589
      %v674 = vpack.c.b16 %v594, %v590
      %v675 = vpack.c.b16 %v595, %v591
      %v676 = vpack.c.b16 %v596, %v592
      %v677 = vpack.c.b16 %v601, %v597
      %v678 = vpack.c.b16 %v602, %v598
      %v679 = vpack.c.b16 %v603, %v599
      %v680 = vpack.c.b16 %v604, %v600
      %v681 = vpack.c.b16 %v609, %v605
      %v682 = vpack.c.b16 %v610, %v606
      %v683 = vpack.c.b16 %v611, %v607
      %v684 = vpack.c.b16 %v612, %v608
      %v685 = vpack.c.b16 %v617, %v613
      %v686 = vpack.c.b16 %v618, %v614
      %v687 = vpack.c.b16 %v619, %v615
      %v688 = vpack.c.b16 %v620, %v616
      %v689 = vpack.c.b16 %v625, %v621
      %v690 = vpack.c.b16 %v626, %v622
      %v691 = vpack.c.b16 %v627, %v623
      %v692 = vpack.c.b16 %v628, %v624
      %757 = vmatprep.subr.bf16.mxu0 %v630
      %758 = vmatpush1.bf16.msra.mxu0 %v629
      %759 = vmatprep.subr.bf16.mxu0 %v634
      %760 = vmatpush1.bf16.msra.mxu0 %v633
      %761 = vmatprep.subr.bf16.mxu0 %v638
      %762 = vmatpush1.bf16.msra.mxu0 %v637
      %763 = vmatprep.subr.bf16.mxu0 %v642
      %764 = vmatpush1.bf16.msra.mxu0 %v641
      %765 = vmatprep.subr.bf16.mxu0 %v646
      %766 = vmatpush1.bf16.msra.mxu0 %v645
      %767 = vmatprep.subr.bf16.mxu0 %v650
      %768 = vmatpush1.bf16.msra.mxu0 %v649
      %769 = vmatprep.subr.bf16.mxu0 %v654
      %770 = vmatpush1.bf16.msra.mxu0 %v653
      %771 = vmatprep.subr.bf16.mxu0 %v658
      %772 = vmatpush1.bf16.msra.mxu0 %v657
      %773 = vmatprep.subr.bf16.mxu0 %v662
      %774 = vmatpush1.bf16.msra.mxu0 %v661
      %775 = vmatprep.subr.bf16.mxu0 %v666
      %776 = vmatpush1.bf16.msra.mxu0 %v665
      %777 = vmatprep.subr.bf16.mxu0 %v670
      %778 = vmatpush1.bf16.msra.mxu0 %v669
      %779 = vmatprep.subr.bf16.mxu0 %v674
      %780 = vmatpush1.bf16.msra.mxu0 %v673
      %781 = vmatprep.subr.bf16.mxu0 %v678
      %782 = vmatpush1.bf16.msra.mxu0 %v677
      %783 = vmatprep.subr.bf16.mxu0 %v682
      %784 = vmatpush1.bf16.msra.mxu0 %v681
      %785 = vmatprep.subr.bf16.mxu0 %v686
      %786 = vmatpush1.bf16.msra.mxu0 %v685
      %787 = vmatprep.subr.bf16.mxu0 %v690
      %788 = vmatpush1.bf16.msra.mxu0 %v689
      %789 = vmatprep.mubr.bf16.mxu0 %v350
      %790 = vmatmul.mubr.bf16.gmra.mrb[0].mxu0 %v349
      %v791 = vpop.f32.mrb[0].mxu0
      %v792 = vadd.f32 %v420, %v791
      %v793 = vpop.f32.mrb[0].mxu0
      %v794 = vadd.f32 %v424, %v793
      %v795 = vpop.f32.mrb[0].mxu0
      %v796 = vpop.f32.mrb[0].mxu0
      %797 = vdwg.mxu0
      %798 = vmatprep.subr.bf16.mxu0 %v632
      %799 = vmatpush1.bf16.msra.mxu0 %v631
      %800 = vmatprep.subr.bf16.mxu0 %v636
      %801 = vmatpush1.bf16.msra.mxu0 %v635
      %802 = vmatprep.subr.bf16.mxu0 %v640
      %803 = vmatpush1.bf16.msra.mxu0 %v639
      %804 = vmatprep.subr.bf16.mxu0 %v644
      %805 = vmatpush1.bf16.msra.mxu0 %v643
      %806 = vmatprep.subr.bf16.mxu0 %v648
      %807 = vmatpush1.bf16.msra.mxu0 %v647
      %808 = vmatprep.subr.bf16.mxu0 %v652
      %809 = vmatpush1.bf16.msra.mxu0 %v651
      %810 = vmatprep.subr.bf16.mxu0 %v656
      %811 = vmatpush1.bf16.msra.mxu0 %v655
      %812 = vmatprep.subr.bf16.mxu0 %v660
      %813 = vmatpush1.bf16.msra.mxu0 %v659
      %814 = vmatprep.subr.bf16.mxu0 %v664
      %815 = vmatpush1.bf16.msra.mxu0 %v663
      %816 = vmatprep.subr.bf16.mxu0 %v668
      %817 = vmatpush1.bf16.msra.mxu0 %v667
      %818 = vmatprep.subr.bf16.mxu0 %v672
      %819 = vmatpush1.bf16.msra.mxu0 %v671
      %820 = vmatprep.subr.bf16.mxu0 %v676
      %821 = vmatpush1.bf16.msra.mxu0 %v675
      %822 = vmatprep.subr.bf16.mxu0 %v680
      %823 = vmatpush1.bf16.msra.mxu0 %v679
      %824 = vmatprep.subr.bf16.mxu0 %v684
      %825 = vmatpush1.bf16.msra.mxu0 %v683
      %826 = vmatprep.subr.bf16.mxu0 %v688
      %827 = vmatpush1.bf16.msra.mxu0 %v687
      %828 = vmatprep.subr.bf16.mxu0 %v692
      %829 = vmatpush1.bf16.msra.mxu0 %v691
      %830 = vmatprep.mubr.bf16.mxu0 %v350
      %831 = vmatmul.mubr.bf16.gmra.mrb[0].mxu0 %v349
      %v832 = vpop.f32.mrb[0].mxu0
      %v833 = vadd.f32 %v428, %v832
      %v834 = vpop.f32.mrb[0].mxu0
      %v835 = vadd.f32 %v432, %v834
      %v836 = vpop.f32.mrb[0].mxu0
      %v837 = vpop.f32.mrb[0].mxu0
      %838 = vdwg.mxu0
      %v839 = vpack.c.bf16 %v792, %v792
      %v840 = vpack.c.bf16 %v794, %v794
      %v841 = vpack.c.bf16 %v833, %v833
      %v842 = vpack.c.bf16 %v835, %v835
      %v843 = vtanh.bf16.pop %v839
      %v844 = vtanh.bf16.pop %v840
      %v845 = vtanh.bf16.pop %v841
      %v846 = vtanh.bf16.pop %v842
      %v847 = vld [vmem:[%s5] sm:$0xf]
      %v848 = vld [vmem:[%s5 + $0x4] sm:$0xf]
      %v849 = vld [vmem:[%s5 + $0x8] sm:$0xf]
      %v850 = vld [vmem:[%s5 + $0xc] sm:$0xf]
      %v851 = vld [vmem:[%s5 + $0x10] sm:$0xf]
      %v852 = vld [vmem:[%s5 + $0x14] sm:$0xf]
      %v853 = vld [vmem:[%s5 + $0x18] sm:$0xf]
      %v854 = vld [vmem:[%s5 + $0x1c] sm:$0xf]
      %v855 = vld [vmem:[%s5 + $0x20] sm:$0xf]
      %v856 = vld [vmem:[%s5 + $0x24] sm:$0xf]
      %v857 = vld [vmem:[%s5 + $0x28] sm:$0xf]
      %v858 = vld [vmem:[%s5 + $0x2c] sm:$0xf]
      %v859 = vld [vmem:[%s5 + $0x30] sm:$0xf]
      %v860 = vld [vmem:[%s5 + $0x34] sm:$0xf]
      %v861 = vld [vmem:[%s5 + $0x38] sm:$0xf]
      %v862 = vld [vmem:[%s5 + $0x3c] sm:$0xf]
      %v863 = vld [vmem:[%s5 + $0x40] sm:$0xf]
      %v864 = vld [vmem:[%s5 + $0x44] sm:$0xf]
      %v865 = vld [vmem:[%s5 + $0x48] sm:$0xf]
      %v866 = vld [vmem:[%s5 + $0x4c] sm:$0xf]
      %v867 = vld [vmem:[%s5 + $0x50] sm:$0xf]
      %v868 = vld [vmem:[%s5 + $0x54] sm:$0xf]
      %v869 = vld [vmem:[%s5 + $0x58] sm:$0xf]
      %v870 = vld [vmem:[%s5 + $0x5c] sm:$0xf]
      %v871 = vld [vmem:[%s5 + $0x60] sm:$0xf]
      %v872 = vld [vmem:[%s5 + $0x64] sm:$0xf]
      %v873 = vld [vmem:[%s5 + $0x68] sm:$0xf]
      %v874 = vld [vmem:[%s5 + $0x6c] sm:$0xf]
      %v875 = vld [vmem:[%s5 + $0x70] sm:$0xf]
      %v876 = vld [vmem:[%s5 + $0x74] sm:$0xf]
      %v877 = vld [vmem:[%s5 + $0x78] sm:$0xf]
      %v878 = vld [vmem:[%s5 + $0x7c] sm:$0xf]
      %v879 = vld [vmem:[%s5 + $0x80] sm:$0xf]
      %v880 = vld [vmem:[%s5 + $0x84] sm:$0xf]
      %v881 = vld [vmem:[%s5 + $0x88] sm:$0xf]
      %v882 = vld [vmem:[%s5 + $0x8c] sm:$0xf]
      %v883 = vld [vmem:[%s5 + $0x90] sm:$0xf]
      %v884 = vld [vmem:[%s5 + $0x94] sm:$0xf]
      %v885 = vld [vmem:[%s5 + $0x98] sm:$0xf]
      %v886 = vld [vmem:[%s5 + $0x9c] sm:$0xf]
      %v887 = vld [vmem:[%s5 + $0xa0] sm:$0xf]
      %v888 = vld [vmem:[%s5 + $0xa4] sm:$0xf]
      %v889 = vld [vmem:[%s5 + $0xa8] sm:$0xf]
      %v890 = vld [vmem:[%s5 + $0xac] sm:$0xf]
      %v891 = vld [vmem:[%s5 + $0xb0] sm:$0xf]
      %v892 = vld [vmem:[%s5 + $0xb4] sm:$0xf]
      %v893 = vld [vmem:[%s5 + $0xb8] sm:$0xf]
      %v894 = vld [vmem:[%s5 + $0xbc] sm:$0xf]
      %v895 = vld [vmem:[%s5 + $0xc0] sm:$0xf]
      %v896 = vld [vmem:[%s5 + $0xc4] sm:$0xf]
      %v897 = vld [vmem:[%s5 + $0xc8] sm:$0xf]
      %v898 = vld [vmem:[%s5 + $0xcc] sm:$0xf]
      %v899 = vld [vmem:[%s5 + $0xd0] sm:$0xf]
      %v900 = vld [vmem:[%s5 + $0xd4] sm:$0xf]
      %v901 = vld [vmem:[%s5 + $0xd8] sm:$0xf]
      %v902 = vld [vmem:[%s5 + $0xdc] sm:$0xf]
      %v903 = vld [vmem:[%s5 + $0xe0] sm:$0xf]
      %v904 = vld [vmem:[%s5 + $0xe4] sm:$0xf]
      %v905 = vld [vmem:[%s5 + $0xe8] sm:$0xf]
      %v906 = vld [vmem:[%s5 + $0xec] sm:$0xf]
      %v907 = vld [vmem:[%s5 + $0xf0] sm:$0xf]
      %v908 = vld [vmem:[%s5 + $0xf4] sm:$0xf]
      %v909 = vld [vmem:[%s5 + $0xf8] sm:$0xf]
      %v910 = vld [vmem:[%s5 + $0xfc] sm:$0xf]
      %v911 = vld [vmem:[%s6] sm:$0x1]
      %v913 = vlaneseq
      %v914 = vshrl.u32 %v913, 7
      %v915 = vsub.s32 0, %v914
      %v916 = vrot.slane %v911, %v915
      %v982 = vunpack.c.l.b16 %v847
      %v983 = vunpack.c.l.b16 %v848
      %v984 = vunpack.c.l.b16 %v849
      %v985 = vunpack.c.l.b16 %v850
      %v986 = vunpack.c.l.b16 %v851
      %v987 = vunpack.c.l.b16 %v852
      %v988 = vunpack.c.l.b16 %v853
      %v989 = vunpack.c.l.b16 %v854
      %v990 = vunpack.c.l.b16 %v855
      %v991 = vunpack.c.l.b16 %v856
      %v992 = vunpack.c.l.b16 %v857
      %v993 = vunpack.c.l.b16 %v858
      %v994 = vunpack.c.l.b16 %v859
      %v995 = vunpack.c.l.b16 %v860
      %v996 = vunpack.c.l.b16 %v861
      %v997 = vunpack.c.l.b16 %v862
      %v998 = vunpack.c.l.b16 %v863
      %v999 = vunpack.c.l.b16 %v864
      %v1000 = vunpack.c.l.b16 %v865
      %v1001 = vunpack.c.l.b16 %v866
      %v1002 = vunpack.c.l.b16 %v867
      %v1003 = vunpack.c.l.b16 %v868
      %v1004 = vunpack.c.l.b16 %v869
      %v1005 = vunpack.c.l.b16 %v870
      %v1006 = vunpack.c.l.b16 %v871
      %v1007 = vunpack.c.l.b16 %v872
      %v1008 = vunpack.c.l.b16 %v873
      %v1009 = vunpack.c.l.b16 %v874
      %v1010 = vunpack.c.l.b16 %v875
      %v1011 = vunpack.c.l.b16 %v876
      %v1012 = vunpack.c.l.b16 %v877
      %v1013 = vunpack.c.l.b16 %v878
      %v1014 = vunpack.c.l.b16 %v879
      %v1015 = vunpack.c.l.b16 %v880
      %v1016 = vunpack.c.l.b16 %v881
      %v1017 = vunpack.c.l.b16 %v882
      %v1018 = vunpack.c.l.b16 %v883
      %v1019 = vunpack.c.l.b16 %v884
      %v1020 = vunpack.c.l.b16 %v885
      %v1021 = vunpack.c.l.b16 %v886
      %v1022 = vunpack.c.l.b16 %v887
      %v1023 = vunpack.c.l.b16 %v888
      %v1024 = vunpack.c.l.b16 %v889
      %v1025 = vunpack.c.l.b16 %v890
      %v1026 = vunpack.c.l.b16 %v891
      %v1027 = vunpack.c.l.b16 %v892
      %v1028 = vunpack.c.l.b16 %v893
      %v1029 = vunpack.c.l.b16 %v894
      %v1030 = vunpack.c.l.b16 %v895
      %v1031 = vunpack.c.l.b16 %v896
      %v1032 = vunpack.c.l.b16 %v897
      %v1033 = vunpack.c.l.b16 %v898
      %v1034 = vunpack.c.l.b16 %v899
      %v1035 = vunpack.c.l.b16 %v900
      %v1036 = vunpack.c.l.b16 %v901
      %v1037 = vunpack.c.l.b16 %v902
      %v1038 = vunpack.c.l.b16 %v903
      %v1039 = vunpack.c.l.b16 %v904
      %v1040 = vunpack.c.l.b16 %v905
      %v1041 = vunpack.c.l.b16 %v906
      %v1042 = vunpack.c.l.b16 %v907
      %v1043 = vunpack.c.l.b16 %v908
      %v1044 = vunpack.c.l.b16 %v909
      %v1045 = vunpack.c.l.b16 %v910
      %v1046 = vpack.c.b16 %v983, %v982
      %v1047 = vpack.c.b16 %v985, %v984
      %v1048 = vpack.c.b16 %v987, %v986
      %v1049 = vpack.c.b16 %v989, %v988
      %v1050 = vpack.c.b16 %v991, %v990
      %v1051 = vpack.c.b16 %v993, %v992
      %v1052 = vpack.c.b16 %v995, %v994
      %v1053 = vpack.c.b16 %v997, %v996
      %v1054 = vpack.c.b16 %v999, %v998
      %v1055 = vpack.c.b16 %v1001, %v1000
      %v1056 = vpack.c.b16 %v1003, %v1002
      %v1057 = vpack.c.b16 %v1005, %v1004
      %v1058 = vpack.c.b16 %v1007, %v1006
      %v1059 = vpack.c.b16 %v1009, %v1008
      %v1060 = vpack.c.b16 %v1011, %v1010
      %v1061 = vpack.c.b16 %v1013, %v1012
      %v1062 = vpack.c.b16 %v1015, %v1014
      %v1063 = vpack.c.b16 %v1017, %v1016
      %v1064 = vpack.c.b16 %v1019, %v1018
      %v1065 = vpack.c.b16 %v1021, %v1020
      %v1066 = vpack.c.b16 %v1023, %v1022
      %v1067 = vpack.c.b16 %v1025, %v1024
      %v1068 = vpack.c.b16 %v1027, %v1026
      %v1069 = vpack.c.b16 %v1029, %v1028
      %v1070 = vpack.c.b16 %v1031, %v1030
      %v1071 = vpack.c.b16 %v1033, %v1032
      %v1072 = vpack.c.b16 %v1035, %v1034
      %v1073 = vpack.c.b16 %v1037, %v1036
      %v1074 = vpack.c.b16 %v1039, %v1038
      %v1075 = vpack.c.b16 %v1041, %v1040
      %v1076 = vpack.c.b16 %v1043, %v1042
      %v1077 = vpack.c.b16 %v1045, %v1044
      %1110 = vmatprep.subr.bf16.mxu0 0
      %1111 = vmatpush1.bf16.msra.mxu0 %v1046
      %1112 = vmatprep.subr.bf16.mxu0 0
      %1113 = vmatpush1.bf16.msra.mxu0 %v1047
      %1114 = vmatprep.subr.bf16.mxu0 0
      %1115 = vmatpush1.bf16.msra.mxu0 %v1048
      %1116 = vmatprep.subr.bf16.mxu0 0
      %1117 = vmatpush1.bf16.msra.mxu0 %v1049
      %1118 = vmatprep.subr.bf16.mxu0 0
      %1119 = vmatpush1.bf16.msra.mxu0 %v1050
      %1120 = vmatprep.subr.bf16.mxu0 0
      %1121 = vmatpush1.bf16.msra.mxu0 %v1051
      %1122 = vmatprep.subr.bf16.mxu0 0
      %1123 = vmatpush1.bf16.msra.mxu0 %v1052
      %1124 = vmatprep.subr.bf16.mxu0 0
      %1125 = vmatpush1.bf16.msra.mxu0 %v1053
      %1126 = vmatprep.subr.bf16.mxu0 0
      %1127 = vmatpush1.bf16.msra.mxu0 %v1054
      %1128 = vmatprep.subr.bf16.mxu0 0
      %1129 = vmatpush1.bf16.msra.mxu0 %v1055
      %1130 = vmatprep.subr.bf16.mxu0 0
      %1131 = vmatpush1.bf16.msra.mxu0 %v1056
      %1132 = vmatprep.subr.bf16.mxu0 0
      %1133 = vmatpush1.bf16.msra.mxu0 %v1057
      %1134 = vmatprep.subr.bf16.mxu0 0
      %1135 = vmatpush1.bf16.msra.mxu0 %v1058
      %1136 = vmatprep.subr.bf16.mxu0 0
      %1137 = vmatpush1.bf16.msra.mxu0 %v1059
      %1138 = vmatprep.subr.bf16.mxu0 0
      %1139 = vmatpush1.bf16.msra.mxu0 %v1060
      %1140 = vmatprep.subr.bf16.mxu0 0
      %1141 = vmatpush1.bf16.msra.mxu0 %v1061
      %1142 = vmatprep.mubr.bf16.mxu0 %v844
      %1143 = vmatmul.mubr.bf16.gmra.mrb[0].mxu0 %v843
      %v1144 = vpop.f32.mrb[0].mxu0
      %v1145 = vadd.f32 %v916, %v1144
      %v1146 = vpop.f32.mrb[0].mxu0
      %v1147 = vpop.f32.mrb[0].mxu0
      %v1148 = vpop.f32.mrb[0].mxu0
      %1149 = vdwg.mxu0
      %1150 = vmatprep.subr.bf16.mxu0 0
      %1151 = vmatpush1.bf16.msra.mxu0 %v1062
      %1152 = vmatprep.subr.bf16.mxu0 0
      %1153 = vmatpush1.bf16.msra.mxu0 %v1063
      %1154 = vmatprep.subr.bf16.mxu0 0
      %1155 = vmatpush1.bf16.msra.mxu0 %v1064
      %1156 = vmatprep.subr.bf16.mxu0 0
      %1157 = vmatpush1.bf16.msra.mxu0 %v1065
      %1158 = vmatprep.subr.bf16.mxu0 0
      %1159 = vmatpush1.bf16.msra.mxu0 %v1066
      %1160 = vmatprep.subr.bf16.mxu0 0
      %1161 = vmatpush1.bf16.msra.mxu0 %v1067
      %1162 = vmatprep.subr.bf16.mxu0 0
      %1163 = vmatpush1.bf16.msra.mxu0 %v1068
      %1164 = vmatprep.subr.bf16.mxu0 0
      %1165 = vmatpush1.bf16.msra.mxu0 %v1069
      %1166 = vmatprep.subr.bf16.mxu0 0
      %1167 = vmatpush1.bf16.msra.mxu0 %v1070
      %1168 = vmatprep.subr.bf16.mxu0 0
      %1169 = vmatpush1.bf16.msra.mxu0 %v1071
      %1170 = vmatprep.subr.bf16.mxu0 0
      %1171 = vmatpush1.bf16.msra.mxu0 %v1072
      %1172 = vmatprep.subr.bf16.mxu0 0
      %1173 = vmatpush1.bf16.msra.mxu0 %v1073
      %1174 = vmatprep.subr.bf16.mxu0 0
      %1175 = vmatpush1.bf16.msra.mxu0 %v1074
      %1176 = vmatprep.subr.bf16.mxu0 0
      %1177 = vmatpush1.bf16.msra.mxu0 %v1075
      %1178 = vmatprep.subr.bf16.mxu0 0
      %1179 = vmatpush1.bf16.msra.mxu0 %v1076
      %1180 = vmatprep.subr.bf16.mxu0 0
      %1181 = vmatpush1.bf16.msra.mxu0 %v1077
      %1182 = vmatprep.mubr.bf16.mxu0 %v846
      %1183 = vmatmul.mubr.bf16.gmra.mrb[0].mxu0 %v845
      %v1184 = vpop.f32.mrb[0].mxu0
      %v1185 = vadd.f32 %v1145, %v1184
      %v1186 = vpop.f32.mrb[0].mxu0
      %v1187 = vpop.f32.mrb[0].mxu0
      %v1188 = vpop.f32.mrb[0].mxu0
      %1189 = vdwg.mxu0
      %vm1190 = vcmask 64512
      %1191 = vst.msk [vmem:[%s273] sm:$0xff] %vm1190, %v1185
      %p1192 = scmp.lt.s32.totalorder %s18, 1
      %s1193 = scalar_select %p1192, %s18, 1
      %s1194 = smul.addr %s1193, 8
      %s1195 = scalar_lea.vmem %s7, %s1194
      // Predicated region
      $region49: #{generator_forward.1} parent=47 // pred_check
        %p1196 = pneg %p188
      $region50: #{generator_forward.1} parent=47 // pred_check_branch
        %1198 = sbr.rel (%p1196) target = $region52
      $region51: #{generator_forward.1} parent=47 // pred_region
        _
      $region52: #{generator_forward.1} parent=47 // pred_fallthru
        _
    $region48: #{generator_forward.1} parent=5 // pred_fallthru
      _
    %p1199 = scmp.le.s32.totalorder 2, %s13
    // Predicated region
    $region53: #{generator_forward.1} parent=5 // pred_check
      %p1200 = pneg %p1199
    $region54: #{generator_forward.1} parent=5 // pred_check_branch
      %1202 = sbr.rel (%p1200) target = $region56
    $region55: #{generator_forward.1} parent=5 // pred_region
      %s1203 = ssub.s32 %s13, 2
      // Predicated region
      $region57: #{generator_forward.1} parent=55 // pred_check
        %p1204 = pneg %p194
      $region58: #{generator_forward.1} parent=55 // pred_check_branch
        %1206 = sbr.rel (%p1204) target = $region60
      $region59: #{generator_forward.1} parent=55 // pred_region
        %p1207 = scmp.lt.s32.totalorder %s19, 1
        %s1208 = scalar_select %p1207, %s19, 1
        %s1209 = smul.addr %s1208, 8
        %s1210 = scalar_lea.vmem %s7, %s1209
      $region60: #{generator_forward.1} parent=55 // pred_fallthru
        _
    $region56: #{generator_forward.1} parent=5 // pred_fallthru
      _
  $region6: #{generator_forward.1} parent=0 // loop_footer
    %s17 = sadd.s32 1, %s13
  $region7: #{generator_forward.1} parent=0 // loop_footer_branch
    %12 = sbr.rel target = $region3
  $region8: #{generator_forward.1} parent=0 // loop_exit
    _

</llo_original>
